<compile_context>
chip_gen: v7x
topology: tpu7x:2x2x1
jax: 0.10.0
libtpu: 0.0.40
codegen_flags: <defaults>
</compile_context>

<pallas_src>
import functools

import jax
import jax.numpy as jnp
from jax.experimental import pallas as pl
from jax.experimental.pallas import tpu as pltpu

GEN_EPS = 1e-7        # GENConv message eps:  msg = relu(x_j) + eps
BN_EPS = 1e-5         # torch.nn.BatchNorm1d default eps
SOFTMAX_T = 1.0       # GENConv temperature (t=1.0, learn_t=False)


@functools.lru_cache(maxsize=1)
def _vmem_limit():
    """Per-generation scoped-VMEM limit (75% of capacity), with safe fallback."""
    try:
        cap = int(pltpu.get_tpu_info().vmem_capacity_bytes)
        return min(cap * 3 // 4, 100 * 1024 * 1024)
    except Exception:
        return 32 * 1024 * 1024


def _tile_stats(z):
    """Per-tile partial stats [sum; sumsq; max; min] -> (4, Hp)."""
    return jnp.concatenate(
        [jnp.sum(z, axis=0, keepdims=True),
         jnp.sum(z * z, axis=0, keepdims=True),
         jnp.max(z, axis=0, keepdims=True),
         jnp.min(z, axis=0, keepdims=True)], axis=0)


# --------------------------- node feature encoder ---------------------------

def _encoder_kernel(n_real, tile_m, x_ref, w_ref, b_ref, o_ref, st_ref):
    i = pl.program_id(0)                      # hoisted: never inside pl.when
    z = jnp.dot(x_ref[...], w_ref[...],
                preferred_element_type=jnp.float32) + b_ref[...]
    row = i * tile_m + jax.lax.broadcasted_iota(jnp.int32, z.shape, 0)
    z = jnp.where(row < n_real, z, 0.0)       # padded node rows stay exactly zero
    o_ref[...] = z
    st_ref[...] = _tile_stats(z)[None, :, :]


def encoder_linear(x_bf16, w_bf16, b, *, n_real, tile_m):
    Np, K = x_bf16.shape
    Hp = w_bf16.shape[1]
    G = Np // tile_m
    return pl.pallas_call(
        functools.partial(_encoder_kernel, n_real, tile_m),
        out_shape=(jax.ShapeDtypeStruct((Np, Hp), jnp.float32),
                   jax.ShapeDtypeStruct((G, 4, Hp), jnp.float32)),
        grid=(G,),
        in_specs=[
            pl.BlockSpec((tile_m, K), lambda i: (i, 0)),
            pl.BlockSpec((K, Hp), lambda i: (0, 0)),
            pl.BlockSpec((1, Hp), lambda i: (0, 0)),
        ],
        out_specs=(pl.BlockSpec((tile_m, Hp), lambda i: (i, 0)),
                   pl.BlockSpec((1, 4, Hp), lambda i: (i, 0, 0))),
        compiler_params=pltpu.CompilerParams(
            dimension_semantics=("parallel",),
            vmem_limit_bytes=_vmem_limit()),
    )(x_bf16, w_bf16, b.reshape(1, Hp))


# --------------- combine per-tile stats -> BN params + stabilizer -----------

def _finalize_kernel(n_real, apply_bn, ps_ref, g_ref, bt_ref,
                     mean_ref, rstd_ref, stab_ref):
    ps = ps_ref[...]                          # (G, 4, Hp)
    ssum = jnp.sum(ps, axis=0)                # rows 0,1 valid
    smax = jnp.max(ps, axis=0)                # row 2 valid
    smin = jnp.min(ps, axis=0)                # row 3 valid
    s = ssum[0:1, :]
    ss = ssum[1:2, :]
    cmx = smax[2:3, :]
    cmn = smin[3:4, :]
    if apply_bn:
        inv_n = 1.0 / n_real                  # padded rows are exactly zero
        mean = s * inv_n
        var = jnp.maximum(ss * inv_n - mean * mean, 0.0)   # biased (torch BN fwd)
        rstd = jax.lax.rsqrt(var + BN_EPS)
        sc = rstd * g_ref[...]
        # exact per-channel upper bound of relu(BN(h)) over rows (affine is
        # monotone, so the extremum is at cmax or cmin); padded-zero rows are
        # extra candidates and can only enlarge the bound (safe).
        hi = (cmx - mean) * sc + bt_ref[...]
        lo = (cmn - mean) * sc + bt_ref[...]
        pro_max = jnp.maximum(jnp.maximum(hi, lo), 0.0)
    else:
        mean = jnp.zeros_like(s)
        rstd = jnp.ones_like(s)
        pro_max = jnp.maximum(cmx, 0.0)
    mean_ref[...] = mean
    rstd_ref[...] = rstd
    stab_ref[...] = SOFTMAX_T * (pro_max + GEN_EPS)   # >= t*msg for every row


def stats_finalize(pstats, gamma, beta, *, n_real, apply_bn):
    G, _, Hp = pstats.shape
    return pl.pallas_call(
        functools.partial(_finalize_kernel, n_real, apply_bn),
        out_shape=(jax.ShapeDtypeStruct((1, Hp), jnp.float32),
                   jax.ShapeDtypeStruct((1, Hp), jnp.float32),
                   jax.ShapeDtypeStruct((1, Hp), jnp.float32)),
        grid=(1,),
        in_specs=[
            pl.BlockSpec((G, 4, Hp), lambda i: (0, 0, 0)),
            pl.BlockSpec((1, Hp), lambda i: (0, 0)),
            pl.BlockSpec((1, Hp), lambda i: (0, 0)),
        ],
        out_specs=(pl.BlockSpec((1, Hp), lambda i: (0, 0)),
                   pl.BlockSpec((1, Hp), lambda i: (0, 0)),
                   pl.BlockSpec((1, Hp), lambda i: (0, 0))),
        compiler_params=pltpu.CompilerParams(
            dimension_semantics=("arbitrary",),
            vmem_limit_bytes=_vmem_limit()),
    )(pstats, gamma, beta)


# -------- precompute packed softmax messages  [e*msg | e]  in bf16 -----------

def _pack_kernel(hp, apply_bn, mean_ref, rstd_ref, g_ref, bt_ref, stab_ref,
                 h_ref, o_ref):
    h = h_ref[...]
    if apply_bn:
        # BN (batch stats) -> ReLU -> dropout(eval: identity) of the 'res+' block
        h = jnp.maximum((h - mean_ref[...]) * rstd_ref[...] * g_ref[...]
                        + bt_ref[...], 0.0)
    msg = jnp.maximum(h, 0.0) + GEN_EPS                   # message(x_j) = relu(x_j)+eps
    e = jnp.exp(SOFTMAX_T * msg - stab_ref[...])          # globally stabilized, e <= 1
    # lane-aligned slice stores (no concatenate copies)
    o_ref[:, :hp] = (e * msg).astype(jnp.bfloat16)
    o_ref[:, hp:] = e.astype(jnp.bfloat16)


def pack_messages(h, mean, rstd, gamma, beta, stab, *, apply_bn, tile_m):
    Np, Hp = h.shape
    return pl.pallas_call(
        functools.partial(_pack_kernel, Hp, apply_bn),
        out_shape=jax.ShapeDtypeStruct((Np, 2 * Hp), jnp.bfloat16),
        grid=(Np // tile_m,),
        in_specs=[pl.BlockSpec((1, Hp), lambda i: (0, 0))] * 5
                 + [pl.BlockSpec((tile_m, Hp), lambda i: (i, 0))],
        out_specs=pl.BlockSpec((tile_m, 2 * Hp), lambda i: (i, 0)),
        compiler_params=pltpu.CompilerParams(
            dimension_semantics=("parallel",),
            vmem_limit_bytes=_vmem_limit()),
    )(mean, rstd, gamma, beta, stab, h)


# ------------------- GENConv (softmax_sg) + residual  ------------------------

def _genconv_kernel(n_real, tile_m, hp, apply_bn, add_res,
                    mean_ref, rstd_ref, g_ref, bt_ref,
                    hrow_ref, pk_ref, a_ref, w_ref, b_ref,
                    o_ref, st_ref, acc_ref):
    # grid-index reads hoisted out of pl.when bodies
    i = pl.program_id(0)
    k = pl.program_id(1)
    nk = pl.num_programs(1)
    row_base = i * tile_m

    @pl.when(k == 0)
    def _():
        acc_ref[...] = jnp.zeros_like(acc_ref)

    # inner loop: pure DMA + one MXU pass   A_tile @ [e*msg | e]
    acc_ref[...] += jnp.dot(a_ref[...].astype(jnp.bfloat16), pk_ref[...],
                            preferred_element_type=jnp.float32)

    @pl.when(k == nk - 1)
    def _():
        acc = acc_ref[...]
        num = acc[:, :hp]                     # 128-lane-aligned slices
        den = acc[:, hp:]
        agg = jnp.where(den > 0.0, num / jnp.maximum(den, 1e-30), 0.0)
        hr = hrow_ref[...]
        if apply_bn:
            h2 = jnp.maximum((hr - mean_ref[...]) * rstd_ref[...] * g_ref[...]
                             + bt_ref[...], 0.0)
        else:
            h2 = hr
        y = h2 + agg                                           # GENConv root add
        out = jnp.dot(y.astype(jnp.bfloat16), w_ref[...],
                      preferred_element_type=jnp.float32) + b_ref[...]
        if add_res:
            out = out + hr                                     # 'res+' residual
        row = row_base + jax.lax.broadcasted_iota(jnp.int32, out.shape, 0)
        out = jnp.where(row < n_real, out, 0.0)                # keep pad rows zero
        o_ref[...] = out
        st_ref[...] = _tile_stats(out)[None, :, :]             # fused BN partials


def genconv(h, packed, adj_i8, w_bf16, b, mean, rstd, gamma, beta, *,
            n_real, apply_bn, add_res, tile_m, tile_k):
    Np, Hp = h.shape
    G = Np // tile_m
    kern = functools.partial(_genconv_kernel, n_real, tile_m, Hp,
                             apply_bn, add_res)
    return pl.pallas_call(
        kern,
        out_shape=(jax.ShapeDtypeStruct((Np, Hp), jnp.float32),
                   jax.ShapeDtypeStruct((G, 4, Hp), jnp.float32)),
        grid=(G, Np // tile_k),
        in_specs=[
            pl.BlockSpec((1, Hp), lambda i, k: (0, 0)),            # mean
            pl.BlockSpec((1, Hp), lambda i, k: (0, 0)),            # rstd
            pl.BlockSpec((1, Hp), lambda i, k: (0, 0)),            # gamma
            pl.BlockSpec((1, Hp), lambda i, k: (0, 0)),            # beta
            pl.BlockSpec((tile_m, Hp), lambda i, k: (i, 0)),       # h rows (self + res)
            pl.BlockSpec((tile_k, 2 * Hp), lambda i, k: (k, 0)),   # packed messages
            pl.BlockSpec((tile_m, tile_k), lambda i, k: (i, k)),   # adjacency (int8)
            pl.BlockSpec((Hp, Hp), lambda i, k: (0, 0)),           # GENConv MLP weight
            pl.BlockSpec((1, Hp), lambda i, k: (0, 0)),            # GENConv MLP bias
        ],
        out_specs=(pl.BlockSpec((tile_m, Hp), lambda i, k: (i, 0)),
                   pl.BlockSpec((1, 4, Hp), lambda i, k: (i, 0, 0))),
        scratch_shapes=[pltpu.VMEM((tile_m, 2 * Hp), jnp.float32)],  # [num | den]
        compiler_params=pltpu.CompilerParams(
            dimension_semantics=("parallel", "arbitrary"),
            vmem_limit_bytes=_vmem_limit()),
    )(mean, rstd, gamma, beta, h, packed, adj_i8, w_bf16, b.reshape(1, Hp))


# ------------- fused BN+ReLU -> prediction linear -> log_softmax ------------

def _pred_kernel(out_ch, mean_ref, rstd_ref, g_ref, bt_ref,
                 h_ref, w_ref, b_ref, o_ref):
    h2 = jnp.maximum((h_ref[...] - mean_ref[...]) * rstd_ref[...] * g_ref[...]
                     + bt_ref[...], 0.0)
    z = jnp.dot(h2.astype(jnp.bfloat16), w_ref[...],
                preferred_element_type=jnp.float32) + b_ref[...]
    col = jax.lax.broadcasted_iota(jnp.int32, z.shape, 1)
    z = jnp.where(col < out_ch, z, -1e30)          # mask padded logit columns
    zmax = jnp.max(z, axis=-1, keepdims=True)
    zs = z - zmax
    lse = jnp.log(jnp.sum(jnp.exp(zs), axis=-1, keepdims=True))
    o_ref[...] = zs - lse


def pred_head(h, mean, rstd, gamma, beta, w_bf16, b, *, out_ch, tile_m):
    Np, Hp = h.shape
    Cp = w_bf16.shape[1]
    return pl.pallas_call(
        functools.partial(_pred_kernel, out_ch),
        out_shape=jax.ShapeDtypeStruct((Np, Cp), jnp.float32),
        grid=(Np // tile_m,),
        in_specs=[
            pl.BlockSpec((1, Hp), lambda i: (0, 0)),
            pl.BlockSpec((1, Hp), lambda i: (0, 0)),
            pl.BlockSpec((1, Hp), lambda i: (0, 0)),
            pl.BlockSpec((1, Hp), lambda i: (0, 0)),
            pl.BlockSpec((tile_m, Hp), lambda i: (i, 0)),
            pl.BlockSpec((Hp, Cp), lambda i: (0, 0)),
            pl.BlockSpec((1, Cp), lambda i: (0, 0)),
        ],
        out_specs=pl.BlockSpec((tile_m, Cp), lambda i: (i, 0)),
        compiler_params=pltpu.CompilerParams(
            dimension_semantics=("parallel",),
            vmem_limit_bytes=_vmem_limit()),
    )(mean, rstd, gamma, beta, h, w_bf16, b.reshape(1, Cp))


# -------------------------------- DeeperGCN ---------------------------------

def deeper_gcn_forward(x_pad_bf16, adj_i8, params, num_layers, *,
                       n_real, out_ch, tile_m=1024, tile_k=512):
    """block='res+':
       h = enc(x); h = gcn0(h); for l>=1: h = gcn_l(relu(BN(h))) + h;
       h = relu(BN(h)); out = log_softmax(pred(h))."""
    Np = x_pad_bf16.shape[0]
    tile_m = min(tile_m, Np)
    tile_k = min(tile_k, Np)
    assert Np % tile_m == 0 and Np % tile_k == 0
    Hp = params["enc_w"].shape[1]
    ones = jnp.ones((1, Hp), jnp.float32)
    zeros = jnp.zeros((1, Hp), jnp.float32)

    h, pstats = encoder_linear(x_pad_bf16, params["enc_w"], params["enc_b"],
                               n_real=n_real, tile_m=tile_m)

    # layer 0: GraphConv only (no BN/ReLU prologue, no residual)
    _, _, stab = stats_finalize(pstats, ones, zeros, n_real=n_real, apply_bn=False)
    packed = pack_messages(h, zeros, ones, ones, zeros, stab,
                           apply_bn=False, tile_m=tile_m)
    h, pstats = genconv(h, packed, adj_i8,
                        params["gcn_w"][0], params["gcn_b"][0],
                        zeros, ones, ones, zeros,
                        n_real=n_real, apply_bn=False, add_res=False,
                        tile_m=tile_m, tile_k=tile_k)

    # layers 1..L-1:  h = GENConv(dropout(relu(BN(h)))) + h
    for layer in range(1, num_layers):
        g = params["bn_g"][layer - 1]
        bt = params["bn_b"][layer - 1]
        mean, rstd, stab = stats_finalize(pstats, g, bt,
                                          n_real=n_real, apply_bn=True)
        # TODO(synk): dropout(p=0.5) is stochastic; identity in eval/deterministic mode.
        packed = pack_messages(h, mean, rstd, g, bt, stab,
                               apply_bn=True, tile_m=tile_m)
        h, pstats = genconv(h, packed, adj_i8,
                            params["gcn_w"][layer], params["gcn_b"][layer],
                            mean, rstd, g, bt,
                            n_real=n_real, apply_bn=True, add_res=True,
                            tile_m=tile_m, tile_k=tile_k)

    # final BN -> ReLU -> dropout -> prediction linear -> log_softmax (fused)
    g = params["bn_g"][num_layers - 1]
    bt = params["bn_b"][num_layers - 1]
    mean, rstd, _ = stats_finalize(pstats, g, bt, n_real=n_real, apply_bn=True)
    return pred_head(h, mean, rstd, g, bt,
                     params["pred_w"], params["pred_b"],
                     out_ch=out_ch, tile_m=tile_m)


# ----------------------------------- main ------------------------------------

if __name__ == "__main__":
    N_NODES = 200          # real node count (padded to the row tile)
    IN_CH = 16
    HID = 32               # real hidden width  (lane-padded to 128)
    OUT_CH = 8             # real class count   (lane-padded to 128)
    NUM_LAYERS = 3
    N_EDGES = 1024
    HID_PAD = 128
    OUT_PAD = 128
    # Small demo tiles so grid(0) >= 2 (v7x megacore); production default (1024, 512).
    TILE_M = 128
    TILE_K = 128

    N_PAD = ((N_NODES + TILE_M - 1) // TILE_M) * TILE_M
    assert N_PAD % TILE_K == 0

    key = jax.random.PRNGKey(0)
    keys = jax.random.split(key, 8)

    x = jax.random.normal(keys[0], (N_NODES, IN_CH), jnp.float32)
    src = jax.random.randint(keys[1], (N_EDGES,), 0, N_NODES)
    dst = jax.random.randint(keys[2], (N_EDGES,), 0, N_NODES)
    # dense adjacency with edge multiplicities: A[dst, src] += 1  (PyG src->dst)
    adj = jnp.zeros((N_NODES, N_NODES), jnp.float32).at[dst, src].add(1.0)
    assert int(jnp.max(adj)) <= 127, "int8 adjacency requires multiplicity <= 127"

    def init_linear(k, fan_in, fan_out):
        kw, kb = jax.random.split(k)
        w = jax.random.normal(kw, (fan_in, fan_out), jnp.float32) * 0.1
        b = jax.random.normal(kb, (fan_out,), jnp.float32) * 0.01
        return w, b

    enc_w, enc_b = init_linear(keys[3], IN_CH, HID)
    pred_w, pred_b = init_linear(keys[4], HID, OUT_CH)

    gcn_w, gcn_b, bn_g, bn_b = [], [], [], []
    lkeys = jax.random.split(keys[5], NUM_LAYERS)
    for l in range(NUM_LAYERS):
        w, b = init_linear(lkeys[l], HID, HID)      # GENConv MLP (mlp_layers=1)
        gcn_w.append(w)
        gcn_b.append(b)
        bn_g.append(1.0 + 0.1 * jax.random.normal(jax.random.fold_in(keys[6], l),
                                                  (HID,), jnp.float32))
        bn_b.append(0.1 * jax.random.normal(jax.random.fold_in(keys[7], l),
                                            (HID,), jnp.float32))

    # ---- pure-JAX reference (same bf16 MXU operands, f32 accumulate) ----
    def bdot(a, b):
        return jnp.dot(a.astype(jnp.bfloat16), b.astype(jnp.bfloat16),
                       preferred_element_type=jnp.float32)

    def reference_forward(x, adj):
        def bn_relu(h, g, b):
            mean = jnp.mean(h, axis=0, keepdims=True)
            var = jnp.mean((h - mean) ** 2, axis=0, keepdims=True)
            return jnp.maximum((h - mean) * jax.lax.rsqrt(var + BN_EPS) * g + b, 0.0)

        def gen(hx, w, b):
            msg = jnp.maximum(hx, 0.0) + GEN_EPS
            s = SOFTMAX_T * msg
            e = jnp.exp(s - jnp.max(s, axis=0, keepdims=True))
            num = bdot(adj, e * msg)
            den = bdot(adj, e)
            agg = jnp.where(den > 0.0, num / jnp.maximum(den, 1e-30), 0.0)
            return bdot(hx + agg, w) + b

        h = bdot(x, enc_w) + enc_b
        h = gen(h, gcn_w[0], gcn_b[0])
        for l in range(1, NUM_LAYERS):
            h2 = bn_relu(h, bn_g[l - 1], bn_b[l - 1])
            h = gen(h2, gcn_w[l], gcn_b[l]) + h
        h2 = bn_relu(h, bn_g[NUM_LAYERS - 1], bn_b[NUM_LAYERS - 1])
        z = bdot(h2, pred_w) + pred_b
        return jax.nn.log_softmax(z, axis=-1)

    ref = reference_forward(x, adj)

    # ---- padded / quantized operands for the Pallas kernels ----
    def pad2(a, r, c):
        return jnp.zeros((r, c), a.dtype).at[:a.shape[0], :a.shape[1]].set(a)

    def pad_vec(v, n, fill=0.0):
        return jnp.full((n,), fill, v.dtype).at[:v.shape[0]].set(v)

    x_pad_bf16 = pad2(x, N_PAD, IN_CH).astype(jnp.bfloat16)
    adj_i8 = pad2(adj, N_PAD, N_PAD).astype(jnp.int8)   # small ints: exact

    params = dict(
        enc_w=pad2(enc_w, IN_CH, HID_PAD).astype(jnp.bfloat16),
        enc_b=pad_vec(enc_b, HID_PAD),
        pred_w=pad2(pred_w, HID_PAD, OUT_PAD).astype(jnp.bfloat16),
        pred_b=pad_vec(pred_b, OUT_PAD),
        gcn_w=[pad2(w, HID_PAD, HID_PAD).astype(jnp.bfloat16) for w in gcn_w],
        gcn_b=[pad_vec(b, HID_PAD) for b in gcn_b],
        bn_g=[pad_vec(g, HID_PAD, fill=1.0).reshape(1, HID_PAD) for g in bn_g],
        bn_b=[pad_vec(b, HID_PAD).reshape(1, HID_PAD) for b in bn_b],
    )

    out_pad = deeper_gcn_forward(x_pad_bf16, adj_i8, params, NUM_LAYERS,
                                 n_real=N_NODES, out_ch=OUT_CH,
                                 tile_m=TILE_M, tile_k=TILE_K)
    out_pad = jax.block_until_ready(out_pad)
    out = out_pad[:N_NODES, :OUT_CH]

    # sanity: shape, finiteness, rows exponentiate to the simplex, matches reference
    assert out.shape == (N_NODES, OUT_CH)
    assert bool(jnp.all(jnp.isfinite(out)))
    row_sums = jnp.sum(jnp.exp(out), axis=-1)
    assert bool(jnp.all(jnp.abs(row_sums - 1.0) < 1e-3))
    max_err = float(jnp.max(jnp.abs(out - ref)))
    assert max_err < 0.2, f"mismatch vs reference: {max_err}"

    print("KERNEL_OK")
</pallas_src>

<mosaic_0001>
module attributes {stable_mosaic.version = 11 : i64} {
  func.func @_encoder_kernel(%arg0: i32, %arg1: memref<128x16xbf16, #tpu.memory_space<vmem>>, %arg2: memref<16x128xbf16, #tpu.memory_space<vmem>>, %arg3: memref<1x128xf32, #tpu.memory_space<vmem>>, %arg4: memref<128x128xf32, #tpu.memory_space<vmem>>, %arg5: memref<1x4x128xf32, #tpu.memory_space<vmem>>) attributes {dimension_semantics = [#tpu.dimension_semantics<parallel>], iteration_bounds = array<i64: 2>, scalar_prefetch = 0 : i64, scratch_operands = 0 : i64, tpu.core_type = #tpu.core_type<tc>, window_params = [{transform_indices = @transform_0, window_bounds = array<i64: 128, 16>}, {pipeline_mode = #tpu.pipeline_mode<synchronous>, transform_indices = @transform_1, window_bounds = array<i64: 16, 128>}, {pipeline_mode = #tpu.pipeline_mode<synchronous>, transform_indices = @transform_2, window_bounds = array<i64: 1, 128>}, {transform_indices = @transform_3, window_bounds = array<i64: 128, 128>}, {transform_indices = @transform_4, window_bounds = array<i64: 1, 4, 128>}]} {
    %c0 = arith.constant 0 : index
    %c0_0 = arith.constant 0 : index
    %0 = vector.load %arg1[%c0, %c0_0] : memref<128x16xbf16, #tpu.memory_space<vmem>>, vector<128x16xbf16>
    %c0_1 = arith.constant 0 : index
    %c0_2 = arith.constant 0 : index
    %1 = vector.load %arg2[%c0_1, %c0_2] : memref<16x128xbf16, #tpu.memory_space<vmem>>, vector<16x128xbf16>
    %cst = arith.constant dense<0.000000e+00> : vector<128x128xf32>
    %2 = tpu.matmul %0, %1, %cst {dimension_numbers = #tpu.dot_dimension_numbers<[1], [0], [0], [1], [0, 0, 1, 1], [], []>} : vector<128x16xbf16>, vector<16x128xbf16>, vector<128x128xf32> -> vector<128x128xf32>
    %c0_3 = arith.constant 0 : index
    %c0_4 = arith.constant 0 : index
    %3 = vector.load %arg3[%c0_3, %c0_4] : memref<1x128xf32, #tpu.memory_space<vmem>>, vector<1x128xf32>
    %4 = vector.broadcast %3 : vector<1x128xf32> to vector<128x128xf32>
    %5 = arith.addf %2, %4 : vector<128x128xf32>
    %c128_i32 = arith.constant 128 : i32
    %6 = arith.muli %arg0, %c128_i32 : i32
    %7 = tpu.iota {dimensions = array<i32: 0>} : vector<128x128xi32>
    %8 = vector.broadcast %6 : i32 to vector<128x128xi32>
    %9 = arith.addi %8, %7 : vector<128x128xi32>
    %c200_i32 = arith.constant 200 : i32
    %10 = vector.broadcast %c200_i32 : i32 to vector<128x128xi32>
    %11 = arith.cmpi slt, %9, %10 : vector<128x128xi32>
    %cst_5 = arith.constant 0.000000e+00 : f32
    %12 = vector.broadcast %cst_5 : f32 to vector<128x128xf32>
    %13 = arith.select %11, %5, %12 : vector<128x128xi1>, vector<128x128xf32>
    %c0_6 = arith.constant 0 : index
    %c0_7 = arith.constant 0 : index
    %14 = vector.load %arg4[%c0_6, %c0_7] : memref<128x128xf32, #tpu.memory_space<vmem>>, vector<128x128xf32>
    tpu.vector_store %arg4[%c0_6, %c0_7], %13 {strides = array<i32>} : memref<128x128xf32, #tpu.memory_space<vmem>>, vector<128x128xf32>,
    %cst_8 = arith.constant dense<0.000000e+00> : vector<128xf32>
    %15 = vector.multi_reduction <add>, %13, %cst_8 [0] : vector<128x128xf32> to vector<128xf32>
    %16 = vector.shape_cast %15 : vector<128xf32> to vector<1x128xf32>
    %17 = arith.mulf %13, %13 : vector<128x128xf32>
    %cst_9 = arith.constant dense<0.000000e+00> : vector<128xf32>
    %18 = vector.multi_reduction <add>, %17, %cst_9 [0] : vector<128x128xf32> to vector<128xf32>
    %19 = vector.shape_cast %18 : vector<128xf32> to vector<1x128xf32>
    %cst_10 = arith.constant dense<0xFF800000> : vector<128xf32>
    %20 = vector.multi_reduction <maximumf>, %13, %cst_10 [0] : vector<128x128xf32> to vector<128xf32>
    %21 = vector.shape_cast %20 : vector<128xf32> to vector<1x128xf32>
    %cst_11 = arith.constant dense<0x7F800000> : vector<128xf32>
    %22 = vector.multi_reduction <minimumf>, %13, %cst_11 [0] : vector<128x128xf32> to vector<128xf32>
    %23 = vector.shape_cast %22 : vector<128xf32> to vector<1x128xf32>
    %24 = tpu.concatenate %16, %19, %21, %23 in 0 : vector<1x128xf32>, vector<1x128xf32>, vector<1x128xf32>, vector<1x128xf32> -> vector<4x128xf32>
    %25 = vector.shape_cast %24 : vector<4x128xf32> to vector<1x4x128xf32>
    %c0_12 = arith.constant 0 : index
    %c0_13 = arith.constant 0 : index
    %c0_14 = arith.constant 0 : index
    %26 = vector.load %arg5[%c0_12, %c0_13, %c0_14] : memref<1x4x128xf32, #tpu.memory_space<vmem>>, vector<1x4x128xf32>
    tpu.vector_store %arg5[%c0_12, %c0_13, %c0_14], %25 {strides = array<i32>} : memref<1x4x128xf32, #tpu.memory_space<vmem>>, vector<1x4x128xf32>,
    return
  }
  func.func @transform_0(%arg0: i32) -> (i32, i32) {
    %c0_i32 = arith.constant 0 : i32
    %c0_i32_0 = arith.constant 0 : i32
    return %arg0, %c0_i32 : i32, i32
  }
  func.func @transform_1(%arg0: i32) -> (i32, i32) {
    %c0_i32 = arith.constant 0 : i32
    %c0_i32_0 = arith.constant 0 : i32
    %c0_i32_1 = arith.constant 0 : i32
    return %c0_i32, %c0_i32_0 : i32, i32
  }
  func.func @transform_2(%arg0: i32) -> (i32, i32) {
    %c0_i32 = arith.constant 0 : i32
    %c0_i32_0 = arith.constant 0 : i32
    %c0_i32_1 = arith.constant 0 : i32
    return %c0_i32, %c0_i32_0 : i32, i32
  }
  func.func @transform_3(%arg0: i32) -> (i32, i32) {
    %c0_i32 = arith.constant 0 : i32
    %c0_i32_0 = arith.constant 0 : i32
    return %arg0, %c0_i32 : i32, i32
  }
  func.func @transform_4(%arg0: i32) -> (i32, i32, i32) {
    %c0_i32 = arith.constant 0 : i32
    %c0_i32_0 = arith.constant 0 : i32
    %c0_i32_1 = arith.constant 0 : i32
    return %arg0, %c0_i32, %c0_i32_0 : i32, i32, i32
  }
}

</mosaic_0001>

<llo_original>
// kernel: tpu_custom_call.1
$region0: #{tpu_custom_call.1}
  #allocation0 [shape = 'u32[]', space=smem, size = 0x4, offset = 0x4, fixed_abs, tag = 'smem constant byte address 0x4 - core index']
  #allocation1 [shape = 'u32[144,128]{1,0:T(1,128)}', space=vmem, size = 0x12000, scoped, tag = 'internal scratch']
  %s0 = inlined_call_operand.vmem [shape: bf16[256,16], index: 0, kind: input, shape index: {}]
  %s1 = inlined_call_operand.vmem [shape: bf16[16,128], index: 1, kind: input, shape index: {}]
  %s2 = inlined_call_operand.vmem [shape: f32[1,128], index: 2, kind: input, shape index: {}]
  %s3 = inlined_call_operand.hbm [shape: f32[256,128], index: 3, kind: output, shape index: {0}]
  %s4 = inlined_call_operand.hbm [shape: f32[2,4,128], index: 4, kind: output, shape index: {1}]
  %5 = xla_tuple %s3, %s4
  %s6 = sld [smem:[#allocation0]]
  $region53: #{tpu_custom_call.1} parent=0
    _
  %s8 = ssub.s32 1, %s6
  %s9 = scalar_select 0, %s8, %s6
  $region1: #{tpu_custom_call.1} parent=0
    #allocation2 [shape = 'u8[131072]{0}', space=vmem, size = 0x20000, scoped, tag = 'output window, operand 0']
    #allocation3 [shape = 's32[2]{0}', space=sflag, size = 0x8, scoped, tag = 'scoped memory for tpu_custom_call.1']
    #allocation4 [shape = 'u8[4096]{0}', space=vmem, size = 0x1000, scoped, tag = 'output window, operand 1']
    #allocation5 [shape = 's32[2]{0}', space=sflag, size = 0x8, scoped, tag = 'scoped memory for tpu_custom_call.1']
    %10 = vsyncpa [#allocation3], 0
    %s11 = scalar_lea.sflag [#allocation3], 1
    %12 = vsyncpa %s11, 0
    %13 = vsyncpa [#allocation5], 0
    %s14 = scalar_lea.sflag [#allocation5], 1
    %15 = vsyncpa %s14, 0
    loop: start=0, step=1, limit=4
    $region2: #{tpu_custom_call.1} parent=1 // loop_pre_header
      _
    $region3: #{tpu_custom_call.1} parent=1 // loop_header
      %s17 = sphi 0, %s21
      %p18 = scmp.ge.s32.totalorder %s17, 4
      %s27 = sphi 0, %s29
      %s30 = sphi 0, %s27
      %s31 = sphi 0, %s30
      %s47 = sphi 0, %s31
      %s51 = sphi 0, %s51
      %s53 = sphi 0, %s51
      %s54 = sphi 0, %s53
      %s68 = sphi 0, %s54
      %s72 = sphi 0, %s72
      %s74 = sphi 0, %s72
      %s75 = sphi 0, %s74
      %s89 = sphi 0, %s75
      %s95 = sphi 0, %s97
      %s98 = sphi 0, %s95
      %s99 = sphi 0, %s98
      %s115 = sphi 0, %s99
      %s121 = sphi 0, %s123
      %s124 = sphi 0, %s121
      %s125 = sphi 0, %s124
      %s141 = sphi 0, %s125
    $region4: #{tpu_custom_call.1} parent=1 // loop_header_branch
      %20 = sbr.rel (%p18) target = $region8
    $region5: #{tpu_custom_call.1} parent=1 // loop_body
      %s22 = ssub.s32 %s17, 1
      %s23 = ssub.s32 %s17, 2
      %s24 = sadd.s32 %s17, 1
      %s25 = ssub.s32 %s17, %s24
      %p26 = scmp.eq.s32.totalorder %s25, 0
      %s28 = sadd.s32 %s27, 1
      %s29 = scalar_select %p26, %s27, %s28
      %p32 = pneg %p26
      %p33 = scmp.eq.s32.totalorder %s17, 1
      %p34 = por %p32, %p33
      %p35 = scmp.ne.s32.totalorder %s27, %s30
      %p36 = scmp.eq.s32.totalorder %s17, 0
      %p37 = por %p35, %p36
      %p38 = scmp.ne.s32.totalorder %s27, %s30
      %p39 = scmp.eq.s32.totalorder %s22, 1
      %p40 = por %p38, %p39
      %p41 = scmp.ne.s32.totalorder %s30, %s31
      %p42 = scmp.eq.s32.totalorder %s22, 0
      %p43 = por %p41, %p42
      %p44 = scmp.ne.s32.totalorder %s30, %s31
      %p45 = scmp.eq.s32.totalorder %s23, 1
      %p46 = por %p44, %p45
      %p48 = scmp.ne.s32.totalorder %s31, %s47
      %p49 = scmp.eq.s32.totalorder %s23, 0
      %p50 = por %p48, %p49
      %s52 = sadd.s32 %s51, 1
      %p55 = scmp.eq.s32.totalorder %s17, 1
      %p56 = scmp.ne.s32.totalorder %s51, %s53
      %p57 = scmp.eq.s32.totalorder %s17, 0
      %p58 = por %p56, %p57
      %p59 = scmp.ne.s32.totalorder %s51, %s53
      %p60 = scmp.eq.s32.totalorder %s22, 1
      %p61 = por %p59, %p60
      %p62 = scmp.ne.s32.totalorder %s53, %s54
      %p63 = scmp.eq.s32.totalorder %s22, 0
      %p64 = por %p62, %p63
      %p65 = scmp.ne.s32.totalorder %s53, %s54
      %p66 = scmp.eq.s32.totalorder %s23, 1
      %p67 = por %p65, %p66
      %p69 = scmp.ne.s32.totalorder %s54, %s68
      %p70 = scmp.eq.s32.totalorder %s23, 0
      %p71 = por %p69, %p70
      %s73 = sadd.s32 %s72, 1
      %p76 = scmp.eq.s32.totalorder %s17, 1
      %p77 = scmp.ne.s32.totalorder %s72, %s74
      %p78 = scmp.eq.s32.totalorder %s17, 0
      %p79 = por %p77, %p78
      %p80 = scmp.ne.s32.totalorder %s72, %s74
      %p81 = scmp.eq.s32.totalorder %s22, 1
      %p82 = por %p80, %p81
      %p83 = scmp.ne.s32.totalorder %s74, %s75
      %p84 = scmp.eq.s32.totalorder %s22, 0
      %p85 = por %p83, %p84
      %p86 = scmp.ne.s32.totalorder %s74, %s75
      %p87 = scmp.eq.s32.totalorder %s23, 1
      %p88 = por %p86, %p87
      %p90 = scmp.ne.s32.totalorder %s75, %s89
      %p91 = scmp.eq.s32.totalorder %s23, 0
      %p92 = por %p90, %p91
      %s93 = ssub.s32 %s17, %s24
      %p94 = scmp.eq.s32.totalorder %s93, 0
      %s96 = sadd.s32 %s95, 1
      %s97 = scalar_select %p94, %s95, %s96
      %p100 = pneg %p94
      %p101 = scmp.eq.s32.totalorder %s17, 1
      %p102 = por %p100, %p101
      %p103 = scmp.ne.s32.totalorder %s95, %s98
      %p104 = scmp.eq.s32.totalorder %s17, 0
      %p105 = por %p103, %p104
      %p106 = scmp.ne.s32.totalorder %s95, %s98
      %p107 = scmp.eq.s32.totalorder %s22, 1
      %p108 = por %p106, %p107
      %p109 = scmp.ne.s32.totalorder %s98, %s99
      %p110 = scmp.eq.s32.totalorder %s22, 0
      %p111 = por %p109, %p110
      %p112 = scmp.ne.s32.totalorder %s98, %s99
      %p113 = scmp.eq.s32.totalorder %s23, 1
      %p114 = por %p112, %p113
      %p116 = scmp.ne.s32.totalorder %s99, %s115
      %p117 = scmp.eq.s32.totalorder %s23, 0
      %p118 = por %p116, %p117
      %s119 = ssub.s32 %s17, %s24
      %p120 = scmp.eq.s32.totalorder %s119, 0
      %s122 = sadd.s32 %s121, 1
      %s123 = scalar_select %p120, %s121, %s122
      %p126 = pneg %p120
      %p127 = scmp.eq.s32.totalorder %s17, 1
      %p128 = por %p126, %p127
      %p129 = scmp.ne.s32.totalorder %s121, %s124
      %p130 = scmp.eq.s32.totalorder %s17, 0
      %p131 = por %p129, %p130
      %p132 = scmp.ne.s32.totalorder %s121, %s124
      %p133 = scmp.eq.s32.totalorder %s22, 1
      %p134 = por %p132, %p133
      %p135 = scmp.ne.s32.totalorder %s124, %s125
      %p136 = scmp.eq.s32.totalorder %s22, 0
      %p137 = por %p135, %p136
      %p138 = scmp.ne.s32.totalorder %s124, %s125
      %p139 = scmp.eq.s32.totalorder %s23, 1
      %p140 = por %p138, %p139
      %p142 = scmp.ne.s32.totalorder %s125, %s141
      %p143 = scmp.eq.s32.totalorder %s23, 0
      %p144 = por %p142, %p143
      %p145 = scmp.le.s32.totalorder 1, %s17
      %p146 = scmp.lt.s32.totalorder %s17, 3
      %p147 = pnand %p145, %p146
      %p148 = pneg %p147
      // Predicated region
      $region9: #{tpu_custom_call.1} parent=5 // pred_check
        _
      $region10: #{tpu_custom_call.1} parent=5 // pred_check_branch
        %150 = sbr.rel (%p147) target = $region12
      $region11: #{tpu_custom_call.1} parent=5 // pred_region
        %s151 = ssub.s32 %s17, 1
        // Predicated region
        $region13: #{tpu_custom_call.1} parent=11 // pred_check
          %p152 = pneg %p64
        $region14: #{tpu_custom_call.1} parent=11 // pred_check_branch
          %154 = sbr.rel (%p152) target = $region16
        $region15: #{tpu_custom_call.1} parent=11 // pred_region
          _
        $region16: #{tpu_custom_call.1} parent=11 // pred_fallthru
          _
        // Predicated region
        $region17: #{tpu_custom_call.1} parent=11 // pred_check
          %p155 = pneg %p85
        $region18: #{tpu_custom_call.1} parent=11 // pred_check_branch
          %157 = sbr.rel (%p155) target = $region20
        $region19: #{tpu_custom_call.1} parent=11 // pred_region
          _
        $region20: #{tpu_custom_call.1} parent=11 // pred_fallthru
          _
      $region12: #{tpu_custom_call.1} parent=5 // pred_fallthru
        _
      %p158 = scmp.lt.s32.totalorder %s17, 2
      // Predicated region
      $region21: #{tpu_custom_call.1} parent=5 // pred_check
        %p159 = pneg %p158
      $region22: #{tpu_custom_call.1} parent=5 // pred_check_branch
        %161 = sbr.rel (%p159) target = $region24
      $region23: #{tpu_custom_call.1} parent=5 // pred_region
        // Predicated region
        $region25: #{tpu_custom_call.1} parent=23 // pred_check
          %p162 = pneg %p37
        $region26: #{tpu_custom_call.1} parent=23 // pred_check_branch
          %164 = sbr.rel (%p162) target = $region28
        $region27: #{tpu_custom_call.1} parent=23 // pred_region
          %s165 = smul.u32 16, %s17
          %p166 = scmp.lt.s32.totalorder %s165, 31
          %s167 = scalar_select %p166, %s165, 31
          %s168 = smul.addr %s167, 4
          %s169 = scalar_lea.vmem %s0, %s168
          %s170 = smul.u32 16, %s17
        $region28: #{tpu_custom_call.1} parent=23 // pred_fallthru
          _
      $region24: #{tpu_custom_call.1} parent=5 // pred_fallthru
        _
      %p171 = scmp.le.s32.totalorder 1, %s17
      %p172 = scmp.lt.s32.totalorder %s17, 3
      %p173 = pnand %p171, %p172
      %p174 = pneg %p173
      // Predicated region
      $region29: #{tpu_custom_call.1} parent=5 // pred_check
        _
      $region30: #{tpu_custom_call.1} parent=5 // pred_check_branch
        %176 = sbr.rel (%p173) target = $region32
      $region31: #{tpu_custom_call.1} parent=5 // pred_region
        %s177 = ssub.s32 %s17, 1
        %s178 = smul.u32 16, %s22
        %p179 = scmp.lt.s32.totalorder %s178, 31
        %s180 = scalar_select %p179, %s178, 31
        %s181 = smul.addr %s180, 4
        %s182 = scalar_lea.vmem %s0, %s181
        %p183 = pneg %p43
        %p184 = pneg %p40
        %p185 = pneg %p64
        %p186 = pneg %p61
        %p187 = pneg %p85
        %p188 = pneg %p82
        %p189 = pneg %p111
        %p190 = pneg %p108
        %s191 = sand.u32 %s98, 1
        %s192 = scalar_lea.sflag [#allocation3], %s191
        %s193 = sand.u32 %s98, 1
        %s194 = smul.addr %s193, 128
        %s195 = scalar_lea.vmem [#allocation2], %s194
        %p196 = pneg %p137
        %p197 = pneg %p134
        %s198 = sand.u32 %s124, 1
        %s199 = scalar_lea.sflag [#allocation5], %s198
        %s200 = sand.u32 %s124, 1
        %s201 = smul.addr %s200, 4
        %s202 = scalar_lea.vmem [#allocation4], %s201
        %s203 = smul.u32 16, %s22
        %p204 = scmp.lt.s32.totalorder %s203, 31
        %s205 = scalar_select %p204, %s203, 31
        %s206 = smul.addr %s205, 4
        %s207 = scalar_lea.vmem %s0, %s206
        %s208 = smul.u32 16, %s22
        %s209 = smul.u32 16, %s22
        %v211 = vld [vmem:[%s207] sm:$0xf]
        %v212 = vld [vmem:[%s207 + $0x4] sm:$0xf]
        %v213 = vld [vmem:[%s207 + $0x8] sm:$0xf]
        %v214 = vld [vmem:[%s207 + $0xc] sm:$0xf]
        %v215 = vld [vmem:[%s207 + $0x10] sm:$0xf]
        %v216 = vld [vmem:[%s207 + $0x14] sm:$0xf]
        %v217 = vld [vmem:[%s207 + $0x18] sm:$0xf]
        %v218 = vld [vmem:[%s207 + $0x1c] sm:$0xf]
        %v219 = vld [vmem:[%s207 + $0x20] sm:$0xf]
        %v220 = vld [vmem:[%s207 + $0x24] sm:$0xf]
        %v221 = vld [vmem:[%s207 + $0x28] sm:$0xf]
        %v222 = vld [vmem:[%s207 + $0x2c] sm:$0xf]
        %v223 = vld [vmem:[%s207 + $0x30] sm:$0xf]
        %v224 = vld [vmem:[%s207 + $0x34] sm:$0xf]
        %v225 = vld [vmem:[%s207 + $0x38] sm:$0xf]
        %v226 = vld [vmem:[%s207 + $0x3c] sm:$0xf]
        %v227 = vld [vmem:[%s1] sm:$0xf]
        %v228 = vld [vmem:[%s1 + $0x4] sm:$0xf]
        %v229 = vld [vmem:[%s2] sm:$0x1]
        %v231 = vlaneseq
        %v232 = vshrl.u32 %v231, 7
        %v233 = vsub.s32 0, %v232
        %v234 = vrot.slane %v229, %v233
        %v252 = vunpack.c.l.b16 %v211
        %v253 = vunpack.c.l.b16 %v212
        %v254 = vunpack.c.l.b16 %v213
        %v255 = vunpack.c.l.b16 %v214
        %v256 = vunpack.c.l.b16 %v215
        %v257 = vunpack.c.l.b16 %v216
        %v258 = vunpack.c.l.b16 %v217
        %v259 = vunpack.c.l.b16 %v218
        %v260 = vunpack.c.l.b16 %v219
        %v261 = vunpack.c.l.b16 %v220
        %v262 = vunpack.c.l.b16 %v221
        %v263 = vunpack.c.l.b16 %v222
        %v264 = vunpack.c.l.b16 %v223
        %v265 = vunpack.c.l.b16 %v224
        %v266 = vunpack.c.l.b16 %v225
        %v267 = vunpack.c.l.b16 %v226
        %v268 = vpack.c.b16 %v253, %v252
        %v269 = vpack.c.b16 %v255, %v254
        %v270 = vpack.c.b16 %v257, %v256
        %v271 = vpack.c.b16 %v259, %v258
        %v272 = vpack.c.b16 %v261, %v260
        %v273 = vpack.c.b16 %v263, %v262
        %v274 = vpack.c.b16 %v265, %v264
        %v275 = vpack.c.b16 %v267, %v266
        %v278 = vunpack.c.l.b16 %v227
        %v279 = vunpack.c.l.b16 %v228
        %v280 = vpack.c.b16 %v279, %v278
        %vm282 = vcmask 130048
        %v284 = vsel %vm282, %v268, 0
        %v287 = vsel %vm282, %v269, 0
        %v290 = vsel %vm282, %v270, 0
        %v293 = vsel %vm282, %v271, 0
        %v296 = vsel %vm282, %v272, 0
        %v299 = vsel %vm282, %v273, 0
        %v302 = vsel %vm282, %v274, 0
        %v305 = vsel %vm282, %v275, 0
        %307 = vmatprep.subr.bf16.mxu0 0
        %308 = vmatpush1.bf16.msra.mxu0 %v280
        %309 = vmatprep.subr.bf16.mxu0 0
        %310 = vmatpush1.bf16.msra.mxu0 0
        %311 = vmatprep.subr.bf16.mxu0 0
        %312 = vmatpush1.bf16.msra.mxu0 0
        %313 = vmatprep.subr.bf16.mxu0 0
        %314 = vmatpush1.bf16.msra.mxu0 0
        %315 = vmatprep.subr.bf16.mxu0 0
        %316 = vmatpush1.bf16.msra.mxu0 0
        %317 = vmatprep.subr.bf16.mxu0 0
        %318 = vmatpush1.bf16.msra.mxu0 0
        %319 = vmatprep.subr.bf16.mxu0 0
        %320 = vmatpush1.bf16.msra.mxu0 0
        %321 = vmatprep.subr.bf16.mxu0 0
        %322 = vmatpush1.bf16.msra.mxu0 0
        %323 = vmatprep.subr.bf16.mxu0 0
        %324 = vmatpush1.bf16.msra.mxu0 0
        %325 = vmatprep.subr.bf16.mxu0 0
        %326 = vmatpush1.bf16.msra.mxu0 0
        %327 = vmatprep.subr.bf16.mxu0 0
        %328 = vmatpush1.bf16.msra.mxu0 0
        %329 = vmatprep.subr.bf16.mxu0 0
        %330 = vmatpush1.bf16.msra.mxu0 0
        %331 = vmatprep.subr.bf16.mxu0 0
        %332 = vmatpush1.bf16.msra.mxu0 0
        %333 = vmatprep.subr.bf16.mxu0 0
        %334 = vmatpush1.bf16.msra.mxu0 0
        %335 = vmatprep.subr.bf16.mxu0 0
        %336 = vmatpush1.bf16.msra.mxu0 0
        %337 = vmatprep.subr.bf16.mxu0 0
        %338 = vmatpush1.bf16.msra.mxu0 0
        %339 = vmatprep.mubr.bf16.mxu0 0
        %340 = vmatmul.mubr.bf16.gmra.mrb[0].mxu0 %v284
        %v341 = vpop.f32.mrb[0].mxu0
        %v342 = vadd.f32 %v234, %v341
        %v343 = vpop.f32.mrb[0].mxu0
        %v344 = vpop.f32.mrb[0].mxu0
        %v345 = vadd.f32 %v234, %v344
        %v346 = vpop.f32.mrb[0].mxu0
        %347 = vmatprep.mubr.bf16.mxu0 0
        %348 = vmatmul.mubr.bf16.gmra.mrb[0].mxu0 %v287
        %v349 = vpop.f32.mrb[0].mxu0
        %v350 = vadd.f32 %v234, %v349
        %v351 = vpop.f32.mrb[0].mxu0
        %v352 = vpop.f32.mrb[0].mxu0
        %v353 = vadd.f32 %v234, %v352
        %v354 = vpop.f32.mrb[0].mxu0
        %355 = vmatprep.mubr.bf16.mxu0 0
        %356 = vmatmul.mubr.bf16.gmra.mrb[0].mxu0 %v290
        %v357 = vpop.f32.mrb[0].mxu0
        %v358 = vadd.f32 %v234, %v357
        %v359 = vpop.f32.mrb[0].mxu0
        %v360 = vpop.f32.mrb[0].mxu0
        %v361 = vadd.f32 %v234, %v360
        %v362 = vpop.f32.mrb[0].mxu0
        %363 = vmatprep.mubr.bf16.mxu0 0
        %364 = vmatmul.mubr.bf16.gmra.mrb[0].mxu0 %v293
        %v365 = vpop.f32.mrb[0].mxu0
        %v366 = vadd.f32 %v234, %v365
        %v367 = vpop.f32.mrb[0].mxu0
        %v368 = vpop.f32.mrb[0].mxu0
        %v369 = vadd.f32 %v234, %v368
        %v370 = vpop.f32.mrb[0].mxu0
        %371 = vmatprep.mubr.bf16.mxu0 0
        %372 = vmatmul.mubr.bf16.gmra.mrb[0].mxu0 %v296
        %v373 = vpop.f32.mrb[0].mxu0
        %v374 = vadd.f32 %v234, %v373
        %v375 = vpop.f32.mrb[0].mxu0
        %v376 = vpop.f32.mrb[0].mxu0
        %v377 = vadd.f32 %v234, %v376
        %v378 = vpop.f32.mrb[0].mxu0
        %379 = vmatprep.mubr.bf16.mxu0 0
        %380 = vmatmul.mubr.bf16.gmra.mrb[0].mxu0 %v299
        %v381 = vpop.f32.mrb[0].mxu0
        %v382 = vadd.f32 %v234, %v381
        %v383 = vpop.f32.mrb[0].mxu0
        %v384 = vpop.f32.mrb[0].mxu0
        %v385 = vadd.f32 %v234, %v384
        %v386 = vpop.f32.mrb[0].mxu0
        %387 = vmatprep.mubr.bf16.mxu0 0
        %388 = vmatmul.mubr.bf16.gmra.mrb[0].mxu0 %v302
        %v389 = vpop.f32.mrb[0].mxu0
        %v390 = vadd.f32 %v234, %v389
        %v391 = vpop.f32.mrb[0].mxu0
        %v392 = vpop.f32.mrb[0].mxu0
        %v393 = vadd.f32 %v234, %v392
        %v394 = vpop.f32.mrb[0].mxu0
        %395 = vmatprep.mubr.bf16.mxu0 0
        %396 = vmatmul.mubr.bf16.gmra.mrb[0].mxu0 %v305
        %v397 = vpop.f32.mrb[0].mxu0
        %v398 = vadd.f32 %v234, %v397
        %v399 = vpop.f32.mrb[0].mxu0
        %v400 = vpop.f32.mrb[0].mxu0
        %v401 = vadd.f32 %v234, %v400
        %v402 = vpop.f32.mrb[0].mxu0
        %403 = vdwg.mxu0
        %s404 = smul.u32 %s22, 128
        %v405 = vlaneseq
        %v406 = vshrl.u32 %v405, 7
        %v407 = vadd.s32 %v406, 8
        %v408 = vadd.s32 %v406, 16
        %v409 = vadd.s32 %v406, 24
        %v410 = vadd.s32 %v406, 32
        %v411 = vadd.s32 %v406, 40
        %v412 = vadd.s32 %v406, 48
        %v413 = vadd.s32 %v406, 56
        %v414 = vadd.s32 %v406, 64
        %v415 = vadd.s32 %v406, 72
        %v416 = vadd.s32 %v406, 80
        %v417 = vadd.s32 %v406, 88
        %v418 = vadd.s32 %v406, 96
        %v419 = vadd.s32 %v406, 104
        %v420 = vadd.s32 %v406, 112
        %v421 = vadd.s32 %v406, 120
        %v422 = vstv %s404
        %v423 = vadd.s32 %v422, %v406
        %v424 = vadd.s32 %v422, %v407
        %v425 = vadd.s32 %v422, %v408
        %v426 = vadd.s32 %v422, %v409
        %v427 = vadd.s32 %v422, %v410
        %v428 = vadd.s32 %v422, %v411
        %v429 = vadd.s32 %v422, %v412
        %v430 = vadd.s32 %v422, %v413
        %v431 = vadd.s32 %v422, %v414
        %v432 = vadd.s32 %v422, %v415
        %v433 = vadd.s32 %v422, %v416
        %v434 = vadd.s32 %v422, %v417
        %v435 = vadd.s32 %v422, %v418
        %v436 = vadd.s32 %v422, %v419
        %v437 = vadd.s32 %v422, %v420
        %v438 = vadd.s32 %v422, %v421
        %vm439 = vcmp.lt.s32.totalorder %v423, 200
        %vm440 = vcmp.lt.s32.totalorder %v424, 200
        %vm441 = vcmp.lt.s32.totalorder %v425, 200
        %vm442 = vcmp.lt.s32.totalorder %v426, 200
        %vm443 = vcmp.lt.s32.totalorder %v427, 200
        %vm444 = vcmp.lt.s32.totalorder %v428, 200
        %vm445 = vcmp.lt.s32.totalorder %v429, 200
        %vm446 = vcmp.lt.s32.totalorder %v430, 200
        %vm447 = vcmp.lt.s32.totalorder %v431, 200
        %vm448 = vcmp.lt.s32.totalorder %v432, 200
        %vm449 = vcmp.lt.s32.totalorder %v433, 200
        %vm450 = vcmp.lt.s32.totalorder %v434, 200
        %vm451 = vcmp.lt.s32.totalorder %v435, 200
        %vm452 = vcmp.lt.s32.totalorder %v436, 200
        %vm453 = vcmp.lt.s32.totalorder %v437, 200
        %vm454 = vcmp.lt.s32.totalorder %v438, 200
        %v455 = vsel %vm439, %v342, 0.0
        %v456 = vsel %vm440, %v345, 0.0
        %v457 = vsel %vm441, %v350, 0.0
        %v458 = vsel %vm442, %v353, 0.0
        %v459 = vsel %vm443, %v358, 0.0
        %v460 = vsel %vm444, %v361, 0.0
        %v461 = vsel %vm445, %v366, 0.0
        %v462 = vsel %vm446, %v369, 0.0
        %v463 = vsel %vm447, %v374, 0.0
        %v464 = vsel %vm448, %v377, 0.0
        %v465 = vsel %vm449, %v382, 0.0
        %v466 = vsel %vm450, %v385, 0.0
        %v467 = vsel %vm451, %v390, 0.0
        %v468 = vsel %vm452, %v393, 0.0
        %v469 = vsel %vm453, %v398, 0.0
        %v470 = vsel %vm454, %v401, 0.0
        %471 = vst [vmem:[%s195] sm:$0xff] %v455
        %472 = vst [vmem:[%s195 + $0x8] sm:$0xff] %v456
        %473 = vst [vmem:[%s195 + $0x10] sm:$0xff] %v457
        %474 = vst [vmem:[%s195 + $0x18] sm:$0xff] %v458
        %475 = vst [vmem:[%s195 + $0x20] sm:$0xff] %v459
        %476 = vst [vmem:[%s195 + $0x28] sm:$0xff] %v460
        %477 = vst [vmem:[%s195 + $0x30] sm:$0xff] %v461
        %478 = vst [vmem:[%s195 + $0x38] sm:$0xff] %v462
        %479 = vst [vmem:[%s195 + $0x40] sm:$0xff] %v463
        %480 = vst [vmem:[%s195 + $0x48] sm:$0xff] %v464
        %481 = vst [vmem:[%s195 + $0x50] sm:$0xff] %v465
        %482 = vst [vmem:[%s195 + $0x58] sm:$0xff] %v466
        %483 = vst [vmem:[%s195 + $0x60] sm:$0xff] %v467
        %484 = vst [vmem:[%s195 + $0x68] sm:$0xff] %v468
        %485 = vst [vmem:[%s195 + $0x70] sm:$0xff] %v469
        %486 = vst [vmem:[%s195 + $0x78] sm:$0xff] %v470
        %v487 = vadd.f32 %v455, %v456
        %v488 = vadd.f32 %v487, %v457
        %v489 = vadd.f32 %v488, %v458
        %v490 = vadd.f32 %v489, %v459
        %v491 = vadd.f32 %v490, %v460
        %v492 = vadd.f32 %v491, %v461
        %v493 = vadd.f32 %v492, %v462
        %v494 = vadd.f32 %v493, %v463
        %v495 = vadd.f32 %v494, %v464
        %v496 = vadd.f32 %v495, %v465
        %v497 = vadd.f32 %v496, %v466
        %v498 = vadd.f32 %v497, %v467
        %v499 = vadd.f32 %v498, %v468
        %v500 = vadd.f32 %v499, %v469
        %v501 = vadd.f32 %v500, %v470
        %v502 = vrot.slane %v501, 4
        %v503 = vadd.f32 %v501, %v502
        %v504 = vrot.slane %v503, 2
        %v505 = vadd.f32 %v503, %v504
        %v506 = vrot.slane %v505, 1
        %v507 = vadd.f32 %v505, %v506
        %v508 = vmul.f32 %v455, %v455
        %v509 = vmul.f32 %v456, %v456
        %v510 = vmul.f32 %v457, %v457
        %v511 = vmul.f32 %v458, %v458
        %v512 = vmul.f32 %v459, %v459
        %v513 = vmul.f32 %v460, %v460
        %v514 = vmul.f32 %v461, %v461
        %v515 = vmul.f32 %v462, %v462
        %v516 = vmul.f32 %v463, %v463
        %v517 = vmul.f32 %v464, %v464
        %v518 = vmul.f32 %v465, %v465
        %v519 = vmul.f32 %v466, %v466
        %v520 = vmul.f32 %v467, %v467
        %v521 = vmul.f32 %v468, %v468
        %v522 = vmul.f32 %v469, %v469
        %v523 = vmul.f32 %v470, %v470
        %v524 = vadd.f32 %v508, %v509
        %v525 = vadd.f32 %v524, %v510
        %v526 = vadd.f32 %v525, %v511
        %v527 = vadd.f32 %v526, %v512
        %v528 = vadd.f32 %v527, %v513
        %v529 = vadd.f32 %v528, %v514
        %v530 = vadd.f32 %v529, %v515
        %v531 = vadd.f32 %v530, %v516
        %v532 = vadd.f32 %v531, %v517
        %v533 = vadd.f32 %v532, %v518
        %v534 = vadd.f32 %v533, %v519
        %v535 = vadd.f32 %v534, %v520
        %v536 = vadd.f32 %v535, %v521
        %v537 = vadd.f32 %v536, %v522
        %v538 = vadd.f32 %v537, %v523
        %v539 = vrot.slane %v538, 4
        %v540 = vadd.f32 %v538, %v539
        %v541 = vrot.slane %v540, 2
        %v542 = vadd.f32 %v540, %v541
        %v543 = vrot.slane %v542, 1
        %v544 = vadd.f32 %v542, %v543
        %v545 = vmax.f32 %v455, %v459
        %v546 = vmax.f32 %v456, %v460
        %v547 = vmax.f32 %v457, %v461
        %v548 = vmax.f32 %v458, %v462
        %v549 = vmax.f32 %v545, %v463
        %v550 = vmax.f32 %v546, %v464
        %v551 = vmax.f32 %v547, %v465
        %v552 = vmax.f32 %v548, %v466
        %v553 = vmax.f32 %v549, %v467
        %v554 = vmax.f32 %v550, %v468
        %v555 = vmax.f32 %v551, %v469
        %v556 = vmax.f32 %v552, %v470
        %v557 = vmax.f32 %v553, %v554
        %v558 = vmax.f32 %v555, %v556
        %v559 = vmax.f32 %v557, %v558
        %v560 = vrot.slane %v559, 4
        %v561 = vmax.f32 %v559, %v560
        %v562 = vrot.slane %v561, 2
        %v563 = vmax.f32 %v561, %v562
        %v564 = vrot.slane %v563, 1
        %v565 = vmax.f32 %v563, %v564
        %v566 = vmin.f32 %v455, %v459
        %v567 = vmin.f32 %v456, %v460
        %v568 = vmin.f32 %v457, %v461
        %v569 = vmin.f32 %v458, %v462
        %v570 = vmin.f32 %v566, %v463
        %v571 = vmin.f32 %v567, %v464
        %v572 = vmin.f32 %v568, %v465
        %v573 = vmin.f32 %v569, %v466
        %v574 = vmin.f32 %v570, %v467
        %v575 = vmin.f32 %v571, %v468
        %v576 = vmin.f32 %v572, %v469
        %v577 = vmin.f32 %v573, %v470
        %v578 = vmin.f32 %v574, %v575
        %v579 = vmin.f32 %v576, %v577
        %v580 = vmin.f32 %v578, %v579
        %v581 = vrot.slane %v580, 4
        %v582 = vmin.f32 %v580, %v581
        %v583 = vrot.slane %v582, 2
        %v584 = vmin.f32 %v582, %v583
        %v585 = vrot.slane %v584, 1
        %v586 = vmin.f32 %v584, %v585
        %vm587 = vcmask 1040384
        %v588 = vsel %vm587, %v507, %v544
        %vm589 = vcmask 1041408
        %v590 = vsel %vm589, %v588, %v565
        %vm591 = vcmask 1042432
        %v592 = vsel %vm591, %v590, %v586
        %593 = vst [vmem:[%s202] sm:$0xf] %v592
        %s594 = sand.u32 %s98, 1
        %s595 = scalar_lea.sflag [#allocation3], %s594
        %s596 = sand.u32 %s98, 1
        %s597 = smul.addr %s596, 128
        %s598 = scalar_lea.vmem [#allocation2], %s597
        %s599 = sand.u32 %s124, 1
        %s600 = scalar_lea.sflag [#allocation5], %s599
        %s601 = sand.u32 %s124, 1
        %s602 = smul.addr %s601, 4
        %s603 = scalar_lea.vmem [#allocation4], %s602
        // Predicated region
        $region33: #{tpu_custom_call.1} parent=31 // pred_check
          %p604 = pneg %p108
        $region34: #{tpu_custom_call.1} parent=31 // pred_check_branch
          %606 = sbr.rel (%p604) target = $region36
        $region35: #{tpu_custom_call.1} parent=31 // pred_region
          %s607 = smul.u32 16, %s22
          %s609 = ssub.s32 2048, 2048
          %610 = vsyncadd %s595, %s609
          %s611 = smul.addr %s607, 128
          %s612 = scalar_lea.hbm %s3, %s611
          %s613 = sshll.u32 %s598, 4
          %s614 = int_to_ptr.vmem [resolvable:$true] %s613
          %619 = dma.vmem_to_hbm [thread:$0]  %s614, 2048, %s612, %s595, 128, 128, 8
        $region36: #{tpu_custom_call.1} parent=31 // pred_fallthru
          _
        // Predicated region
        $region37: #{tpu_custom_call.1} parent=31 // pred_check
          %p620 = pneg %p134
        $region38: #{tpu_custom_call.1} parent=31 // pred_check_branch
          %622 = sbr.rel (%p620) target = $region40
        $region39: #{tpu_custom_call.1} parent=31 // pred_region
          %s624 = ssub.s32 64, 64
          %625 = vsyncadd %s600, %s624
          %s626 = smul.addr %s22, 64
          %s627 = scalar_lea.hbm %s4, %s626
          %s629 = sshll.u32 %s603, 4
          %s630 = int_to_ptr.vmem [resolvable:$true] %s629
          %632 = dma.vmem_to_hbm [thread:$0]  %s630, 64, %s627, %s600
        $region40: #{tpu_custom_call.1} parent=31 // pred_fallthru
          _
      $region32: #{tpu_custom_call.1} parent=5 // pred_fallthru
        _
      %p633 = scmp.le.s32.totalorder 2, %s17
      // Predicated region
      $region41: #{tpu_custom_call.1} parent=5 // pred_check
        %p634 = pneg %p633
      $region42: #{tpu_custom_call.1} parent=5 // pred_check_branch
        %636 = sbr.rel (%p634) target = $region44
      $region43: #{tpu_custom_call.1} parent=5 // pred_region
        %s637 = ssub.s32 %s17, 2
        // Predicated region
        $region45: #{tpu_custom_call.1} parent=43 // pred_check
          %p638 = pneg %p114
        $region46: #{tpu_custom_call.1} parent=43 // pred_check_branch
          %640 = sbr.rel (%p638) target = $region48
        $region47: #{tpu_custom_call.1} parent=43 // pred_region
          %s641 = sand.u32 %s99, 1
          %s642 = scalar_lea.sflag [#allocation3], %s641
          %s643 = sand.u32 %s99, 1
          %s644 = smul.addr %s643, 128
          %s645 = scalar_lea.vmem [#allocation2], %s644
          %646 = dma.done %s642, 2048
        $region48: #{tpu_custom_call.1} parent=43 // pred_fallthru
          _
        // Predicated region
        $region49: #{tpu_custom_call.1} parent=43 // pred_check
          %p647 = pneg %p140
        $region50: #{tpu_custom_call.1} parent=43 // pred_check_branch
          %649 = sbr.rel (%p647) target = $region52
        $region51: #{tpu_custom_call.1} parent=43 // pred_region
          %s650 = sand.u32 %s125, 1
          %s651 = scalar_lea.sflag [#allocation5], %s650
          %s652 = sand.u32 %s125, 1
          %s653 = smul.addr %s652, 4
          %s654 = scalar_lea.vmem [#allocation4], %s653
          %655 = dma.done %s651, 64
        $region52: #{tpu_custom_call.1} parent=43 // pred_fallthru
          _
      $region44: #{tpu_custom_call.1} parent=5 // pred_fallthru
        _
    $region6: #{tpu_custom_call.1} parent=1 // loop_footer
      %s21 = sadd.s32 1, %s17
    $region7: #{tpu_custom_call.1} parent=1 // loop_footer_branch
      %16 = sbr.rel target = $region3
    $region8: #{tpu_custom_call.1} parent=1 // loop_exit
      _
    %656 = vsyncpa [#allocation3], 1
    %s657 = scalar_lea.sflag [#allocation3], 1
    %658 = vsyncpa %s657, 1
    %659 = vsyncpa [#allocation5], 1
    %s660 = scalar_lea.sflag [#allocation5], 1
    %661 = vsyncpa %s660, 1

</llo_original>
